<compile_context>
chip_gen: v7x
topology: tpu7x:2x2x1
jax: 0.10.0
libtpu: 0.0.40
codegen_flags: <defaults>
</compile_context>

<pallas_src>
import functools

import jax
import jax.numpy as jnp
from jax.experimental import pallas as pl
from jax.experimental.pallas import tpu as pltpu


MXU_DTYPE = jnp.bfloat16          # MXU operand dtype (f32 accumulation everywhere)
BN_EPS = 1e-3                     # matches nn.BatchNorm2d(out_channels, eps=0.001)


# ------------------------------ static planning -------------------------------

def _same_plan(size, ks, ss):
    """TF-style 'SAME' conv geometry along one axis -> (out, pad_lo)."""
    out = -(-size // ss)
    pad_total = max((out - 1) * ss + ks - size, 0)
    return out, pad_total // 2


def _path_plan(S, T, N, blocks):
    """Static geometry (python ints) for a 2-block separated path, slide-major."""
    ks0, ss0, pt0 = blocks[0]['ks'], blocks[0]['ss'], blocks[0]['pt']
    ks1, ss1, pt1 = blocks[1]['ks'], blocks[1]['ss'], blocks[1]['pt']
    S0, pad0_lo = _same_plan(S, ks0, ss0)
    S1, pad1_lo = _same_plan(S0, ks1, ss1)
    # TODO(synk): S0 % ss1 != 0 would need explicitly-zeroed pad groups in the
    # block-0 output layout; the shipped CLEAR configs always divide exactly.
    assert S0 % ss1 == 0, "block-0 slide output must be divisible by block-1 stride"
    G0 = S0 // ss1
    T0p = T // pt0            # block-0 pooled transverse length (MaxPool floor mode)
    T1p = T0p // pt1          # block-1 pooled transverse length (floor mode)
    M0 = pt1 * ss1 * G0 * N * T1p
    M1 = S1 * N * T1p
    return dict(S=S, T=T, N=N, ks0=ks0, ss0=ss0, pt0=pt0,
                ks1=ks1, ss1=ss1, pt1=pt1, pad0_lo=pad0_lo, pad1_lo=pad1_lo,
                S0=S0, S1=S1, G0=G0, T0p=T0p, T1p=T1p, M0=M0, M1=M1)


# ------------------------------ wrapper packing --------------------------------

def _pack_im2col(x_sm, ks, ss, pt, ss_next, pt_next):
    """Lane-dense im2col for one separated-conv block (wrapper-side XLA).

    x_sm: [N, S, T, C] slide-major input of this block.
    Output: [pt, ks*C, M] with K ordered (tap-major, channel-minor) and M
    ordered (q in pt_next, wp in ss_next, g in S_out//ss_next, n, t), so that
      (a) the kernel does one w[OC,K] @ x[K,M] per pool phase, and
      (b) the *next* block's im2col is a set of contiguous lane slices of the
          resulting [OC, M] (this block's slide output index = wp + ss_next*g,
          its pooled transverse index = pt_next*t + q).
    The transverse conv kernel/stride are 1 and the slide pool is 1 (asserted
    by the caller); the conv transverse row read for pool phase p is
    pt*(pt_next*t + q) + p.
    """
    N, S, T, C = x_sm.shape
    S_out, pad_lo = _same_plan(S, ks, ss)
    L = (S_out - 1) * ss + ks
    pad_hi = max(L - S - pad_lo, 0)
    xpad = jnp.pad(x_sm, ((0, 0), (pad_lo, pad_hi), (0, 0), (0, 0)))
    # im2col taps along the slide axis: [ks, N, S_out, T, C]
    taps = jnp.stack(
        [xpad[:, k:k + (S_out - 1) * ss + 1:ss] for k in range(ks)], axis=0)
    assert S_out % ss_next == 0
    G = S_out // ss_next
    Tq = (T // pt) // pt_next
    taps = taps[:, :, :, :pt * pt_next * Tq, :]
    taps = taps.reshape(ks, N, G, ss_next, Tq, pt_next, pt, C)
    x = jnp.transpose(taps, (6, 0, 7, 5, 3, 2, 1, 4))   # (p, k, c, q, wp, g, n, t)
    return x.reshape(pt, ks * C, pt_next * ss_next * G * N * Tq)


def _coord_maps_slide_major(H, W, axes, slide_w, dtype=jnp.float32):
    """[1, S, T, n_loc] coordinate image (linspace(-1,1) per requested axis)."""
    if not axes:
        shape = (1,) + ((W, H) if slide_w else (H, W)) + (0,)
        return jnp.zeros(shape, dtype)
    maps = []
    for ax in axes:
        if ax == 'height':
            m = jnp.broadcast_to(jnp.linspace(-1.0, 1.0, H, dtype=dtype)[:, None], (H, W))
        elif ax == 'width':
            m = jnp.broadcast_to(jnp.linspace(-1.0, 1.0, W, dtype=dtype)[None, :], (H, W))
        else:
            raise ValueError(f"unknown spatial_location axis: {ax}")
        maps.append(m)
    img = jnp.stack(maps, axis=-1)[None]                 # [1, H, W, n_loc]
    return jnp.transpose(img, (0, 2, 1, 3)) if slide_w else img


def _fold_bn_weights(blk_params, c_data, slide_w):
    """Fold BatchNorm (eval, eps=1e-3) into the conv taps / bias and split the
    taps into data-channel and coordinate-channel parts.

    Returns (w_data [OC, ks*c_data], w_coord [OC, ks*n_loc], shift [OC])."""
    w, b = blk_params['w'], blk_params['b']              # [OC, C_tot, kh, kw], [OC]
    gamma, beta, mean, var = blk_params['bn']
    scale = gamma * jax.lax.rsqrt(var + BN_EPS)
    shift = (b - mean) * scale + beta
    taps = (w[:, :, 0, :] if slide_w else w[:, :, :, 0]) * scale[:, None, None]
    OC = taps.shape[0]
    w_data = jnp.transpose(taps[:, :c_data, :], (0, 2, 1)).reshape(OC, -1)
    w_coord = jnp.transpose(taps[:, c_data:, :], (0, 2, 1)).reshape(OC, -1)
    return w_data, w_coord, shift


def _position_bias(shift, w_coord, coord_img, ks, ss, pt, ss_next, pt_next, N):
    """Per-(pool-phase, OC, M) additive bias = conv bias + BN shift + the
    contribution of the constant coordinate channels (computed with the exact
    same SAME-padding / stride / layout as the data im2col)."""
    OC = shift.shape[0]
    _, S, T, n_loc = coord_img.shape
    S_out, _ = _same_plan(S, ks, ss)
    G = S_out // ss_next
    Tq = (T // pt) // pt_next
    if n_loc:
        cpk = _pack_im2col(coord_img, ks, ss, pt, ss_next, pt_next)   # [pt, ks*n_loc, Mc]
        bias = jnp.einsum('ok,pkm->pom', w_coord, cpk)                # [pt, OC, Mc]
    else:
        bias = jnp.zeros((pt, OC, pt_next * ss_next * G * Tq), jnp.float32)
    bias = bias + shift[None, :, None]
    bias = bias.reshape(pt, OC, pt_next, ss_next, G, 1, Tq)
    bias = jnp.broadcast_to(bias, (pt, OC, pt_next, ss_next, G, N, Tq))
    return bias.reshape(pt, OC, pt_next * ss_next * G * N * Tq).astype(jnp.float32)


def _slide_major_params(kernel, stride, pool, slide_w):
    """Map (kernel, stride, pool) from (H, W) order to slide-major (ks, ss, pt)."""
    kh, kw = kernel
    sh, sw = stride
    ph, pw = pool
    if slide_w:
        ks, ss, kt, st, pt, ps = kw, sw, kh, sh, ph, pw
    else:
        ks, ss, kt, st, pt, ps = kh, sh, kw, sw, pw, ph
    # TODO(synk): transverse conv kernels/strides > 1 and slide-axis pooling
    # would need extra tap loops / an extra pool axis in the packed layout.
    assert kt == 1 and st == 1 and ps == 1, \
        "only separated 1xk / kx1 convs with transverse stride 1 and slide pool 1"
    return ks, ss, pt


def _prepare_path(x_nhwc, blk_params, kernels, strides, pools, axes):
    """Pack one path (time or freq): block-0 im2col, BN-folded weights and the
    per-position biases for both blocks.  Returns (arrays, static_cfg)."""
    N, H, W, C = x_nhwc.shape

    def _slide_w_of(kernel, stride):
        return kernel[1] > 1 or (kernel[0] == 1 and stride[1] > 1)

    slide_w = _slide_w_of(kernels[0], strides[0])
    assert _slide_w_of(kernels[1], strides[1]) == slide_w, \
        "both blocks of a path must slide along the same spatial axis"

    b0 = _slide_major_params(kernels[0], strides[0], pools[0], slide_w)
    b1 = _slide_major_params(kernels[1], strides[1], pools[1], slide_w)
    ks0, ss0, pt0 = b0
    ks1, ss1, pt1 = b1
    S, T = (W, H) if slide_w else (H, W)
    plan = _path_plan(S, T, N, [dict(ks=ks0, ss=ss0, pt=pt0),
                                dict(ks=ks1, ss=ss1, pt=pt1)])

    x_sm = jnp.transpose(x_nhwc, (0, 2, 1, 3)) if slide_w else x_nhwc   # [N,S,T,C]
    # block-0 packed activations (lane-dense M; bf16 cast happens ONCE, here)
    x0 = _pack_im2col(x_sm, ks0, ss0, pt0, ss1, pt1).astype(MXU_DTYPE)

    # block-0 weights / per-position bias (coords + BN folded in)
    w0d, w0c, shift0 = _fold_bn_weights(blk_params[0], C, slide_w)
    c0_img = _coord_maps_slide_major(H, W, axes, slide_w)
    bias0 = _position_bias(shift0, w0c, c0_img, ks0, ss0, pt0, ss1, pt1, N)

    # block-1 weights / per-position bias (its input is block-0's pooled output)
    OC0 = w0d.shape[0]
    w1d, w1c, shift1 = _fold_bn_weights(blk_params[1], OC0, slide_w)
    H1, W1 = (plan['T0p'], plan['S0']) if slide_w else (plan['S0'], plan['T0p'])
    c1_img = _coord_maps_slide_major(H1, W1, axes, slide_w)
    bias1 = _position_bias(shift1, w1c, c1_img, ks1, ss1, pt1, 1, 1, N)

    arrays = (x0, w0d.astype(MXU_DTYPE), bias0, w1d.astype(MXU_DTYPE), bias1)
    cfg = dict(plan, slide_w=slide_w, OC0=OC0, OC1=w1d.shape[0],
               K0=w0d.shape[1], K1=w1d.shape[1])
    return arrays, cfg


# ---------------------------------- kernel -------------------------------------

def _extractor_kernel(x0_ref, w0_ref, b0_ref, w1_ref, b1_ref, out_ref, *, cfg):
    """Both blocks of one {time|freq} path, fully fused.

    x0_ref : [1, pt0, K0, M0]  bf16  block-0 im2col (lane-dense M = 128 lanes)
    w0_ref : [1, OC0, K0]      bf16  block-0 taps (BN scale folded)
    b0_ref : [1, pt0, OC0, M0] f32   conv bias + BN shift + coord-channel term
    w1_ref : [1, OC1, K1]      bf16  block-1 taps
    b1_ref : [1, pt1, OC1, M1] f32
    out_ref: [1, OC1, M1]      f32   block-1 output, M1 ordered (slide, N, transverse)
    """
    pt0, pt1, ks1, ss1 = cfg['pt0'], cfg['pt1'], cfg['ks1'], cfg['ss1']
    pad1, G0, S1, OC0 = cfg['pad1_lo'], cfg['G0'], cfg['S1'], cfg['OC0']
    colw = cfg['N'] * cfg['T1p']

    # ---- block 0: one MXU push per pool phase, epilogue in f32 ----------------
    w0 = w0_ref[0]
    y0 = None
    for p in range(pt0):
        acc = jax.lax.dot_general(w0, x0_ref[0, p], (((1,), (0,)), ((), ())),
                                  preferred_element_type=jnp.float32)
        y = jnp.maximum(acc + b0_ref[0, p], 0.0)          # bias + BN shift + ReLU
        y0 = y if y0 is None else jnp.maximum(y0, y)      # MaxPool (transverse)

    # ---- block 1: VMEM-resident relayout of y0 + one MXU push per pool phase --
    # y0's M layout (q, wp, g, n, t) was chosen so every tap of block-1's im2col
    # is a static, contiguous lane slice of y0 (missing lanes are SAME zero-pad).
    w1 = w1_ref[0]
    res = None
    for q in range(pt1):
        rows = []
        for k in range(ks1):
            d = k - pad1
            wp, g0 = d % ss1, d // ss1
            base = (q * ss1 + wp) * G0 * colw
            g_lo, g_hi = max(0, g0), min(G0, g0 + S1)
            pieces = []
            if g0 < 0:                                     # left SAME padding
                pieces.append(jnp.zeros((OC0, -g0 * colw), jnp.float32))
            if g_hi > g_lo:
                off = base + g_lo * colw
                pieces.append(y0[:, off:off + (g_hi - g_lo) * colw])
            if g0 + S1 > G0:                               # right SAME padding
                pieces.append(jnp.zeros((OC0, (g0 + S1 - G0) * colw), jnp.float32))
            rows.append(pieces[0] if len(pieces) == 1
                        else jnp.concatenate(pieces, axis=1))
        x1 = jnp.concatenate(rows, axis=0).astype(w1.dtype)   # [ks1*OC0, M1], 1 cast
        acc = jax.lax.dot_general(w1, x1, (((1,), (0,)), ((), ())),
                                  preferred_element_type=jnp.float32)
        y = jnp.maximum(acc + b1_ref[0, q], 0.0)
        res = y if res is None else jnp.maximum(res, y)
    out_ref[0] = res


def _fused_paths_call(stacked, cfg):
    """Single pallas_call over a 'parallel' path axis (time=0, freq=1)."""
    x0, w0, b0, w1, b1 = stacked
    P = x0.shape[0]
    kern = functools.partial(_extractor_kernel, cfg=cfg)
    out_shape = jax.ShapeDtypeStruct((P, cfg['OC1'], cfg['M1']), jnp.float32)
    return pl.pallas_call(
        kern,
        out_shape=out_shape,
        grid=(P,),
        in_specs=[
            pl.BlockSpec((1,) + x0.shape[1:], lambda p: (p, 0, 0, 0)),
            pl.BlockSpec((1,) + w0.shape[1:], lambda p: (p, 0, 0)),
            pl.BlockSpec((1,) + b0.shape[1:], lambda p: (p, 0, 0, 0)),
            pl.BlockSpec((1,) + w1.shape[1:], lambda p: (p, 0, 0)),
            pl.BlockSpec((1,) + b1.shape[1:], lambda p: (p, 0, 0, 0)),
        ],
        out_specs=pl.BlockSpec((1, cfg['OC1'], cfg['M1']), lambda p: (p, 0, 0)),
        # One path per grid step: v7x shards the two paths over its two
        # TensorCores; v5e/v6e run a 2-step loop with the second path's DMA
        # overlapped with the first path's compute by the BlockSpec pipeliner.
        compiler_params=pltpu.CompilerParams(dimension_semantics=("parallel",)),
    )(x0, w0, b0, w1, b1)


# --------------------------------- JAX glue -------------------------------------

def pad2d_and_cat_end(tensors):
    """NHWC tensors; pad H/W at the end to the max, concat along channels."""
    Hm = max(t.shape[1] for t in tensors)
    Wm = max(t.shape[2] for t in tensors)
    padded = [jnp.pad(t, ((0, 0), (0, Hm - t.shape[1]),
                          (0, Wm - t.shape[2]), (0, 0))) for t in tensors]
    return jnp.concatenate(padded, axis=-1)


def freq_time_separated_extractor(x_nchw, params, config):
    """NCHW in -> NCHW out; matches the PyTorch module's forward (eval-mode BN)."""
    axes = config['spatial_location']
    nb = len(config['time_kernels'])
    assert nb == 2, "fused kernel is specialised to the 2-block CLEAR config"
    x = jnp.transpose(x_nchw, (0, 2, 3, 1)).astype(jnp.float32)       # NHWC

    # NOTE: pooling is cross-swapped exactly as in the module: the time block
    # pools with freq_stride and the freq block pools with time_stride.
    path_args = {
        'time': (params['time'], config['time_kernels'], config['time_strides'],
                 config['freq_strides']),
        'freq': (params['freq'], config['freq_kernels'], config['freq_strides'],
                 config['time_strides']),
    }
    packed, cfgs = {}, {}
    for name, (prm, ker, st, po) in path_args.items():
        packed[name], cfgs[name] = _prepare_path(x, prm, ker, st, po, axes)

    static_keys = ('pt0', 'pt1', 'ks1', 'ss1', 'pad1_lo', 'G0', 'S1', 'N',
                   'T1p', 'OC0', 'OC1', 'K0', 'K1', 'M0', 'M1')
    assert all(cfgs['time'][k] == cfgs['freq'][k] for k in static_keys), \
        "time/freq paths must share shapes to stack on the parallel grid axis"
    cfg = cfgs['time']

    stacked = tuple(jnp.stack([t, f])
                    for t, f in zip(packed['time'], packed['freq']))
    raw = _fused_paths_call(stacked, cfg)                  # [2, OC1, M1]

    # unpack [OC1, (slide, N, transverse)] -> NHWC per path
    OC1, S1, N, T1 = cfg['OC1'], cfg['S1'], cfg['N'], cfg['T1p']

    def to_nhwc(y, slide_w):
        y = y.reshape(OC1, S1, N, T1)
        perm = (2, 3, 1, 0) if slide_w else (2, 1, 3, 0)   # -> (n, h, w, oc)
        return jnp.transpose(y, perm)

    time_out = to_nhwc(raw[0], cfgs['time']['slide_w'])
    freq_out = to_nhwc(raw[1], cfgs['freq']['slide_w'])

    out = pad2d_and_cat_end([time_out, freq_out])
    if params.get('fusion_w', None) is not None:
        # 1x1 fusion conv (no bias): a 32x32x16 GEMM -- plain XLA dot, no launch.
        Nn, Hh, Ww, Cc = out.shape
        wf = params['fusion_w'].reshape(params['fusion_w'].shape[0], Cc)
        out = (out.reshape(Nn * Hh * Ww, Cc) @ wf.T).reshape(Nn, Hh, Ww, -1)
    return jnp.transpose(out, (0, 3, 1, 2))                # back to NCHW


# ---------------------------- model construction --------------------------------

CONFIG = {
    'spatial_location': ['height', 'width'],
    'out': [8, 16, 16],               # 2 blocks + fusion output channels
    'time_kernels': [[1, 3], [1, 3]],
    'time_strides': [[1, 2], [1, 2]],
    'freq_kernels': [[3, 1], [3, 1]],
    'freq_strides': [[2, 1], [2, 1]],
}


def init_params(key, config, input_channels, with_bias=True):
    n_loc = len(config['spatial_location'])
    nb_blocks = len(config['time_kernels'])
    do_fusion = len(config['out']) > nb_blocks
    keys = iter(jax.random.split(key, 128))

    def conv_init(in_ch, out_ch, kh, kw):
        w = 0.1 * jax.random.normal(next(keys), (out_ch, in_ch, kh, kw), jnp.float32)
        b = (0.05 * jax.random.normal(next(keys), (out_ch,), jnp.float32)
             if with_bias else jnp.zeros((out_ch,), jnp.float32))
        return w, b

    def bn_init(out_ch):
        gamma = 1.0 + 0.1 * jax.random.normal(next(keys), (out_ch,), jnp.float32)
        beta = 0.1 * jax.random.normal(next(keys), (out_ch,), jnp.float32)
        mean = 0.1 * jax.random.normal(next(keys), (out_ch,), jnp.float32)
        var = 0.5 + jax.random.uniform(next(keys), (out_ch,), jnp.float32)
        return (gamma, beta, mean, var)

    params = {'time': [], 'freq': [], 'fusion_w': None}
    in_ch = input_channels + n_loc
    it = zip(config['out'][:-1], config['time_kernels'], config['time_strides'],
             config['freq_kernels'], config['freq_strides'])
    for out_ch, tk, _, fk, _ in it:
        tw, tb = conv_init(in_ch, out_ch, tk[0], tk[1])
        fw, fb = conv_init(in_ch, out_ch, fk[0], fk[1])
        params['time'].append({'w': tw, 'b': tb, 'bn': bn_init(out_ch)})
        params['freq'].append({'w': fw, 'b': fb, 'bn': bn_init(out_ch)})
        in_ch = out_ch + n_loc
    if do_fusion:
        in_ch -= n_loc
        params['fusion_w'] = 0.1 * jax.random.normal(
            next(keys), (config['out'][-1], in_ch * 2, 1, 1), jnp.float32)
    return params


# ------------------------------------ main --------------------------------------

if __name__ == "__main__":
    key = jax.random.PRNGKey(0)
    k_in, k_par = jax.random.split(key)

    B, C, H, W = 2, 4, 16, 16            # NCHW, H = frequency axis, W = time axis
    x = jax.random.normal(k_in, (B, C, H, W), jnp.float32)
    params = init_params(k_par, CONFIG, input_channels=C, with_bias=True)

    fwd = jax.jit(functools.partial(freq_time_separated_extractor, config=CONFIG))
    out = jax.block_until_ready(fwd(x, params))

    assert out.shape == (B, CONFIG['out'][-1], 4, 4), out.shape
    assert bool(jnp.all(jnp.isfinite(out)))
    print("KERNEL_OK")
</pallas_src>

<mosaic_0001>
module attributes {stable_mosaic.version = 11 : i64} {
  func.func @_extractor_kernel(%arg0: i32, %arg1: memref<1x2x12x128xbf16, #tpu.memory_space<vmem>>, %arg2: memref<1x8x12xbf16, #tpu.memory_space<vmem>>, %arg3: memref<1x2x8x128xf32, #tpu.memory_space<vmem>>, %arg4: memref<1x16x24xbf16, #tpu.memory_space<vmem>>, %arg5: memref<1x2x16x32xf32, #tpu.memory_space<vmem>>, %arg6: memref<1x16x32xf32, #tpu.memory_space<vmem>>) attributes {dimension_semantics = [#tpu.dimension_semantics<parallel>], iteration_bounds = array<i64: 2>, scalar_prefetch = 0 : i64, scratch_operands = 0 : i64, tpu.core_type = #tpu.core_type<tc>, window_params = [{transform_indices = @transform_0, window_bounds = array<i64: 1, 2, 12, 128>}, {transform_indices = @transform_1, window_bounds = array<i64: 1, 8, 12>}, {transform_indices = @transform_2, window_bounds = array<i64: 1, 2, 8, 128>}, {transform_indices = @transform_3, window_bounds = array<i64: 1, 16, 24>}, {transform_indices = @transform_4, window_bounds = array<i64: 1, 2, 16, 32>}, {transform_indices = @transform_5, window_bounds = array<i64: 1, 16, 32>}]} {
    %c0 = arith.constant 0 : index
    %c0_0 = arith.constant 0 : index
    %c0_1 = arith.constant 0 : index
    %0 = vector.load %arg2[%c0, %c0_0, %c0_1] : memref<1x8x12xbf16, #tpu.memory_space<vmem>>, vector<1x8x12xbf16>
    %1 = vector.shape_cast %0 : vector<1x8x12xbf16> to vector<8x12xbf16>
    %c0_2 = arith.constant 0 : index
    %c0_3 = arith.constant 0 : index
    %c0_4 = arith.constant 0 : index
    %c0_5 = arith.constant 0 : index
    %2 = vector.load %arg1[%c0_2, %c0_3, %c0_4, %c0_5] : memref<1x2x12x128xbf16, #tpu.memory_space<vmem>>, vector<1x1x12x128xbf16>
    %3 = vector.shape_cast %2 : vector<1x1x12x128xbf16> to vector<12x128xbf16>
    %cst = arith.constant dense<0.000000e+00> : vector<8x128xf32>
    %4 = tpu.matmul %1, %3, %cst {dimension_numbers = #tpu.dot_dimension_numbers<[1], [0], [0], [1], [0, 0, 1, 1], [], []>} : vector<8x12xbf16>, vector<12x128xbf16>, vector<8x128xf32> -> vector<8x128xf32>
    %c0_6 = arith.constant 0 : index
    %c0_7 = arith.constant 0 : index
    %c0_8 = arith.constant 0 : index
    %c0_9 = arith.constant 0 : index
    %5 = vector.load %arg3[%c0_6, %c0_7, %c0_8, %c0_9] : memref<1x2x8x128xf32, #tpu.memory_space<vmem>>, vector<1x1x8x128xf32>
    %6 = vector.shape_cast %5 : vector<1x1x8x128xf32> to vector<8x128xf32>
    %7 = arith.addf %4, %6 : vector<8x128xf32>
    %cst_10 = arith.constant 0.000000e+00 : f32
    %8 = vector.broadcast %cst_10 : f32 to vector<8x128xf32>
    %9 = arith.maximumf %7, %8 : vector<8x128xf32>
    %c0_11 = arith.constant 0 : index
    %c1 = arith.constant 1 : index
    %c0_12 = arith.constant 0 : index
    %c0_13 = arith.constant 0 : index
    %10 = vector.load %arg1[%c0_11, %c1, %c0_12, %c0_13] : memref<1x2x12x128xbf16, #tpu.memory_space<vmem>>, vector<1x1x12x128xbf16>
    %11 = vector.shape_cast %10 : vector<1x1x12x128xbf16> to vector<12x128xbf16>
    %cst_14 = arith.constant dense<0.000000e+00> : vector<8x128xf32>
    %12 = tpu.matmul %1, %11, %cst_14 {dimension_numbers = #tpu.dot_dimension_numbers<[1], [0], [0], [1], [0, 0, 1, 1], [], []>} : vector<8x12xbf16>, vector<12x128xbf16>, vector<8x128xf32> -> vector<8x128xf32>
    %c0_15 = arith.constant 0 : index
    %c1_16 = arith.constant 1 : index
    %c0_17 = arith.constant 0 : index
    %c0_18 = arith.constant 0 : index
    %13 = vector.load %arg3[%c0_15, %c1_16, %c0_17, %c0_18] : memref<1x2x8x128xf32, #tpu.memory_space<vmem>>, vector<1x1x8x128xf32>
    %14 = vector.shape_cast %13 : vector<1x1x8x128xf32> to vector<8x128xf32>
    %15 = arith.addf %12, %14 : vector<8x128xf32>
    %cst_19 = arith.constant 0.000000e+00 : f32
    %16 = vector.broadcast %cst_19 : f32 to vector<8x128xf32>
    %17 = arith.maximumf %15, %16 : vector<8x128xf32>
    %18 = arith.maximumf %9, %17 : vector<8x128xf32>
    %c0_20 = arith.constant 0 : index
    %c0_21 = arith.constant 0 : index
    %c0_22 = arith.constant 0 : index
    %19 = vector.load %arg4[%c0_20, %c0_21, %c0_22] : memref<1x16x24xbf16, #tpu.memory_space<vmem>>, vector<1x16x24xbf16>
    %20 = vector.shape_cast %19 : vector<1x16x24xbf16> to vector<16x24xbf16>
    %21 = vector.extract_strided_slice %18 {offsets = [0, 0], sizes = [8, 32], strides = [1, 1]} : vector<8x128xf32> to vector<8x32xf32>
    %22 = vector.extract_strided_slice %18 {offsets = [0, 32], sizes = [8, 32], strides = [1, 1]} : vector<8x128xf32> to vector<8x32xf32>
    %23 = vector.extract_strided_slice %18 {offsets = [0, 8], sizes = [8, 24], strides = [1, 1]} : vector<8x128xf32> to vector<8x24xf32>
    %cst_23 = arith.constant 0.000000e+00 : f32
    %24 = vector.broadcast %cst_23 : f32 to vector<8x8xf32>
    %25 = tpu.concatenate %23, %24 in 1 : vector<8x24xf32>, vector<8x8xf32> -> vector<8x32xf32>
    %26 = tpu.concatenate %21, %22, %25 in 0 : vector<8x32xf32>, vector<8x32xf32>, vector<8x32xf32> -> vector<24x32xf32>
    %27 = arith.truncf %26 : vector<24x32xf32> to vector<24x32xbf16>
    %cst_24 = arith.constant dense<0.000000e+00> : vector<16x32xf32>
    %28 = tpu.matmul %20, %27, %cst_24 {dimension_numbers = #tpu.dot_dimension_numbers<[1], [0], [0], [1], [0, 0, 1, 1], [], []>} : vector<16x24xbf16>, vector<24x32xbf16>, vector<16x32xf32> -> vector<16x32xf32>
    %c0_25 = arith.constant 0 : index
    %c0_26 = arith.constant 0 : index
    %c0_27 = arith.constant 0 : index
    %c0_28 = arith.constant 0 : index
    %29 = vector.load %arg5[%c0_25, %c0_26, %c0_27, %c0_28] : memref<1x2x16x32xf32, #tpu.memory_space<vmem>>, vector<1x1x16x32xf32>
    %30 = vector.shape_cast %29 : vector<1x1x16x32xf32> to vector<16x32xf32>
    %31 = arith.addf %28, %30 : vector<16x32xf32>
    %cst_29 = arith.constant 0.000000e+00 : f32
    %32 = vector.broadcast %cst_29 : f32 to vector<16x32xf32>
    %33 = arith.maximumf %31, %32 : vector<16x32xf32>
    %34 = vector.extract_strided_slice %18 {offsets = [0, 64], sizes = [8, 32], strides = [1, 1]} : vector<8x128xf32> to vector<8x32xf32>
    %35 = vector.extract_strided_slice %18 {offsets = [0, 96], sizes = [8, 32], strides = [1, 1]} : vector<8x128xf32> to vector<8x32xf32>
    %36 = vector.extract_strided_slice %18 {offsets = [0, 72], sizes = [8, 24], strides = [1, 1]} : vector<8x128xf32> to vector<8x24xf32>
    %cst_30 = arith.constant 0.000000e+00 : f32
    %37 = vector.broadcast %cst_30 : f32 to vector<8x8xf32>
    %38 = tpu.concatenate %36, %37 in 1 : vector<8x24xf32>, vector<8x8xf32> -> vector<8x32xf32>
    %39 = tpu.concatenate %34, %35, %38 in 0 : vector<8x32xf32>, vector<8x32xf32>, vector<8x32xf32> -> vector<24x32xf32>
    %40 = arith.truncf %39 : vector<24x32xf32> to vector<24x32xbf16>
    %cst_31 = arith.constant dense<0.000000e+00> : vector<16x32xf32>
    %41 = tpu.matmul %20, %40, %cst_31 {dimension_numbers = #tpu.dot_dimension_numbers<[1], [0], [0], [1], [0, 0, 1, 1], [], []>} : vector<16x24xbf16>, vector<24x32xbf16>, vector<16x32xf32> -> vector<16x32xf32>
    %c0_32 = arith.constant 0 : index
    %c1_33 = arith.constant 1 : index
    %c0_34 = arith.constant 0 : index
    %c0_35 = arith.constant 0 : index
    %42 = vector.load %arg5[%c0_32, %c1_33, %c0_34, %c0_35] : memref<1x2x16x32xf32, #tpu.memory_space<vmem>>, vector<1x1x16x32xf32>
    %43 = vector.shape_cast %42 : vector<1x1x16x32xf32> to vector<16x32xf32>
    %44 = arith.addf %41, %43 : vector<16x32xf32>
    %cst_36 = arith.constant 0.000000e+00 : f32
    %45 = vector.broadcast %cst_36 : f32 to vector<16x32xf32>
    %46 = arith.maximumf %44, %45 : vector<16x32xf32>
    %47 = arith.maximumf %33, %46 : vector<16x32xf32>
    %c0_37 = arith.constant 0 : index
    %c0_38 = arith.constant 0 : index
    %c0_39 = arith.constant 0 : index
    %48 = vector.load %arg6[%c0_37, %c0_38, %c0_39] : memref<1x16x32xf32, #tpu.memory_space<vmem>>, vector<1x16x32xf32>
    %49 = vector.shape_cast %48 : vector<1x16x32xf32> to vector<16x32xf32>
    %50 = vector.shape_cast %47 : vector<16x32xf32> to vector<1x16x32xf32>
    tpu.vector_store %arg6[%c0_37, %c0_38, %c0_39], %50 {strides = array<i32>} : memref<1x16x32xf32, #tpu.memory_space<vmem>>, vector<1x16x32xf32>,
    return
  }
  func.func @transform_0(%arg0: i32) -> (i32, i32, i32, i32) {
    %c0_i32 = arith.constant 0 : i32
    %c0_i32_0 = arith.constant 0 : i32
    %c0_i32_1 = arith.constant 0 : i32
    %c0_i32_2 = arith.constant 0 : i32
    return %arg0, %c0_i32, %c0_i32_0, %c0_i32_1 : i32, i32, i32, i32
  }
  func.func @transform_1(%arg0: i32) -> (i32, i32, i32) {
    %c0_i32 = arith.constant 0 : i32
    %c0_i32_0 = arith.constant 0 : i32
    %c0_i32_1 = arith.constant 0 : i32
    return %arg0, %c0_i32, %c0_i32_0 : i32, i32, i32
  }
  func.func @transform_2(%arg0: i32) -> (i32, i32, i32, i32) {
    %c0_i32 = arith.constant 0 : i32
    %c0_i32_0 = arith.constant 0 : i32
    %c0_i32_1 = arith.constant 0 : i32
    %c0_i32_2 = arith.constant 0 : i32
    return %arg0, %c0_i32, %c0_i32_0, %c0_i32_1 : i32, i32, i32, i32
  }
  func.func @transform_3(%arg0: i32) -> (i32, i32, i32) {
    %c0_i32 = arith.constant 0 : i32
    %c0_i32_0 = arith.constant 0 : i32
    %c0_i32_1 = arith.constant 0 : i32
    return %arg0, %c0_i32, %c0_i32_0 : i32, i32, i32
  }
  func.func @transform_4(%arg0: i32) -> (i32, i32, i32, i32) {
    %c0_i32 = arith.constant 0 : i32
    %c0_i32_0 = arith.constant 0 : i32
    %c0_i32_1 = arith.constant 0 : i32
    %c0_i32_2 = arith.constant 0 : i32
    return %arg0, %c0_i32, %c0_i32_0, %c0_i32_1 : i32, i32, i32, i32
  }
  func.func @transform_5(%arg0: i32) -> (i32, i32, i32) {
    %c0_i32 = arith.constant 0 : i32
    %c0_i32_0 = arith.constant 0 : i32
    %c0_i32_1 = arith.constant 0 : i32
    return %arg0, %c0_i32, %c0_i32_0 : i32, i32, i32
  }
}

</mosaic_0001>

<llo_original>
// kernel: freq_time_separated_extractor.1
$region0: #{freq_time_separated_extractor.1}
  #allocation0 [shape = 'u32[]', space=smem, size = 0x4, offset = 0x4, fixed_abs, tag = 'smem constant byte address 0x4 - core index']
  #allocation1 [shape = 'u32[144,128]{1,0:T(1,128)}', space=vmem, size = 0x12000, scoped, tag = 'internal scratch']
  %s0 = inlined_call_operand.vmem [shape: bf16[2,2,12,128], index: 0, kind: input, shape index: {}]
  %s1 = inlined_call_operand.vmem [shape: bf16[2,8,12], index: 1, kind: input, shape index: {}]
  %s2 = inlined_call_operand.vmem [shape: f32[2,2,8,128], index: 2, kind: input, shape index: {}]
  %s3 = inlined_call_operand.vmem [shape: bf16[2,16,24], index: 3, kind: input, shape index: {}]
  %s4 = inlined_call_operand.vmem [shape: f32[2,2,16,32], index: 4, kind: input, shape index: {}]
  %s5 = inlined_call_operand.vmem [shape: f32[2,16,32], index: 5, kind: output, shape index: {}]
  %s6 = sld [smem:[#allocation0]]
  $region53: #{freq_time_separated_extractor.1} parent=0
    _
  %s8 = ssub.s32 1, %s6
  %s9 = scalar_select 0, %s8, %s6
  loop: start=0, step=1, limit=4
  $region2: #{freq_time_separated_extractor.1} parent=0 // loop_pre_header
    _
  $region3: #{freq_time_separated_extractor.1} parent=0 // loop_header
    %s11 = sphi 0, %s15
    %p12 = scmp.ge.s32.totalorder %s11, 4
    %s21 = sphi 0, %s23
    %s24 = sphi 0, %s21
    %s25 = sphi 0, %s24
    %s41 = sphi 0, %s25
    %s47 = sphi 0, %s49
    %s50 = sphi 0, %s47
    %s51 = sphi 0, %s50
    %s67 = sphi 0, %s51
    %s73 = sphi 0, %s75
    %s76 = sphi 0, %s73
    %s77 = sphi 0, %s76
    %s93 = sphi 0, %s77
    %s99 = sphi 0, %s101
    %s102 = sphi 0, %s99
    %s103 = sphi 0, %s102
    %s119 = sphi 0, %s103
    %s125 = sphi 0, %s127
    %s128 = sphi 0, %s125
    %s129 = sphi 0, %s128
    %s145 = sphi 0, %s129
    %s151 = sphi 0, %s153
    %s154 = sphi 0, %s151
    %s155 = sphi 0, %s154
    %s171 = sphi 0, %s155
  $region4: #{freq_time_separated_extractor.1} parent=0 // loop_header_branch
    %14 = sbr.rel (%p12) target = $region8
  $region5: #{freq_time_separated_extractor.1} parent=0 // loop_body
    %s16 = ssub.s32 %s11, 1
    %s17 = ssub.s32 %s11, 2
    %s18 = sadd.s32 %s11, 1
    %s19 = ssub.s32 %s11, %s18
    %p20 = scmp.eq.s32.totalorder %s19, 0
    %s22 = sadd.s32 %s21, 1
    %s23 = scalar_select %p20, %s21, %s22
    %p26 = pneg %p20
    %p27 = scmp.eq.s32.totalorder %s11, 1
    %p28 = por %p26, %p27
    %p29 = scmp.ne.s32.totalorder %s21, %s24
    %p30 = scmp.eq.s32.totalorder %s11, 0
    %p31 = por %p29, %p30
    %p32 = scmp.ne.s32.totalorder %s21, %s24
    %p33 = scmp.eq.s32.totalorder %s16, 1
    %p34 = por %p32, %p33
    %p35 = scmp.ne.s32.totalorder %s24, %s25
    %p36 = scmp.eq.s32.totalorder %s16, 0
    %p37 = por %p35, %p36
    %p38 = scmp.ne.s32.totalorder %s24, %s25
    %p39 = scmp.eq.s32.totalorder %s17, 1
    %p40 = por %p38, %p39
    %p42 = scmp.ne.s32.totalorder %s25, %s41
    %p43 = scmp.eq.s32.totalorder %s17, 0
    %p44 = por %p42, %p43
    %s45 = ssub.s32 %s11, %s18
    %p46 = scmp.eq.s32.totalorder %s45, 0
    %s48 = sadd.s32 %s47, 1
    %s49 = scalar_select %p46, %s47, %s48
    %p52 = pneg %p46
    %p53 = scmp.eq.s32.totalorder %s11, 1
    %p54 = por %p52, %p53
    %p55 = scmp.ne.s32.totalorder %s47, %s50
    %p56 = scmp.eq.s32.totalorder %s11, 0
    %p57 = por %p55, %p56
    %p58 = scmp.ne.s32.totalorder %s47, %s50
    %p59 = scmp.eq.s32.totalorder %s16, 1
    %p60 = por %p58, %p59
    %p61 = scmp.ne.s32.totalorder %s50, %s51
    %p62 = scmp.eq.s32.totalorder %s16, 0
    %p63 = por %p61, %p62
    %p64 = scmp.ne.s32.totalorder %s50, %s51
    %p65 = scmp.eq.s32.totalorder %s17, 1
    %p66 = por %p64, %p65
    %p68 = scmp.ne.s32.totalorder %s51, %s67
    %p69 = scmp.eq.s32.totalorder %s17, 0
    %p70 = por %p68, %p69
    %s71 = ssub.s32 %s11, %s18
    %p72 = scmp.eq.s32.totalorder %s71, 0
    %s74 = sadd.s32 %s73, 1
    %s75 = scalar_select %p72, %s73, %s74
    %p78 = pneg %p72
    %p79 = scmp.eq.s32.totalorder %s11, 1
    %p80 = por %p78, %p79
    %p81 = scmp.ne.s32.totalorder %s73, %s76
    %p82 = scmp.eq.s32.totalorder %s11, 0
    %p83 = por %p81, %p82
    %p84 = scmp.ne.s32.totalorder %s73, %s76
    %p85 = scmp.eq.s32.totalorder %s16, 1
    %p86 = por %p84, %p85
    %p87 = scmp.ne.s32.totalorder %s76, %s77
    %p88 = scmp.eq.s32.totalorder %s16, 0
    %p89 = por %p87, %p88
    %p90 = scmp.ne.s32.totalorder %s76, %s77
    %p91 = scmp.eq.s32.totalorder %s17, 1
    %p92 = por %p90, %p91
    %p94 = scmp.ne.s32.totalorder %s77, %s93
    %p95 = scmp.eq.s32.totalorder %s17, 0
    %p96 = por %p94, %p95
    %s97 = ssub.s32 %s11, %s18
    %p98 = scmp.eq.s32.totalorder %s97, 0
    %s100 = sadd.s32 %s99, 1
    %s101 = scalar_select %p98, %s99, %s100
    %p104 = pneg %p98
    %p105 = scmp.eq.s32.totalorder %s11, 1
    %p106 = por %p104, %p105
    %p107 = scmp.ne.s32.totalorder %s99, %s102
    %p108 = scmp.eq.s32.totalorder %s11, 0
    %p109 = por %p107, %p108
    %p110 = scmp.ne.s32.totalorder %s99, %s102
    %p111 = scmp.eq.s32.totalorder %s16, 1
    %p112 = por %p110, %p111
    %p113 = scmp.ne.s32.totalorder %s102, %s103
    %p114 = scmp.eq.s32.totalorder %s16, 0
    %p115 = por %p113, %p114
    %p116 = scmp.ne.s32.totalorder %s102, %s103
    %p117 = scmp.eq.s32.totalorder %s17, 1
    %p118 = por %p116, %p117
    %p120 = scmp.ne.s32.totalorder %s103, %s119
    %p121 = scmp.eq.s32.totalorder %s17, 0
    %p122 = por %p120, %p121
    %s123 = ssub.s32 %s11, %s18
    %p124 = scmp.eq.s32.totalorder %s123, 0
    %s126 = sadd.s32 %s125, 1
    %s127 = scalar_select %p124, %s125, %s126
    %p130 = pneg %p124
    %p131 = scmp.eq.s32.totalorder %s11, 1
    %p132 = por %p130, %p131
    %p133 = scmp.ne.s32.totalorder %s125, %s128
    %p134 = scmp.eq.s32.totalorder %s11, 0
    %p135 = por %p133, %p134
    %p136 = scmp.ne.s32.totalorder %s125, %s128
    %p137 = scmp.eq.s32.totalorder %s16, 1
    %p138 = por %p136, %p137
    %p139 = scmp.ne.s32.totalorder %s128, %s129
    %p140 = scmp.eq.s32.totalorder %s16, 0
    %p141 = por %p139, %p140
    %p142 = scmp.ne.s32.totalorder %s128, %s129
    %p143 = scmp.eq.s32.totalorder %s17, 1
    %p144 = por %p142, %p143
    %p146 = scmp.ne.s32.totalorder %s129, %s145
    %p147 = scmp.eq.s32.totalorder %s17, 0
    %p148 = por %p146, %p147
    %s149 = ssub.s32 %s11, %s18
    %p150 = scmp.eq.s32.totalorder %s149, 0
    %s152 = sadd.s32 %s151, 1
    %s153 = scalar_select %p150, %s151, %s152
    %p156 = pneg %p150
    %p157 = scmp.eq.s32.totalorder %s11, 1
    %p158 = por %p156, %p157
    %p159 = scmp.ne.s32.totalorder %s151, %s154
    %p160 = scmp.eq.s32.totalorder %s11, 0
    %p161 = por %p159, %p160
    %p162 = scmp.ne.s32.totalorder %s151, %s154
    %p163 = scmp.eq.s32.totalorder %s16, 1
    %p164 = por %p162, %p163
    %p165 = scmp.ne.s32.totalorder %s154, %s155
    %p166 = scmp.eq.s32.totalorder %s16, 0
    %p167 = por %p165, %p166
    %p168 = scmp.ne.s32.totalorder %s154, %s155
    %p169 = scmp.eq.s32.totalorder %s17, 1
    %p170 = por %p168, %p169
    %p172 = scmp.ne.s32.totalorder %s155, %s171
    %p173 = scmp.eq.s32.totalorder %s17, 0
    %p174 = por %p172, %p173
    %p175 = scmp.le.s32.totalorder 1, %s11
    %p176 = scmp.lt.s32.totalorder %s11, 3
    %p177 = pnand %p175, %p176
    %p178 = pneg %p177
    // Predicated region
    $region9: #{freq_time_separated_extractor.1} parent=5 // pred_check
      _
    $region10: #{freq_time_separated_extractor.1} parent=5 // pred_check_branch
      %180 = sbr.rel (%p177) target = $region12
    $region11: #{freq_time_separated_extractor.1} parent=5 // pred_region
      %s181 = ssub.s32 %s11, 1
    $region12: #{freq_time_separated_extractor.1} parent=5 // pred_fallthru
      _
    %p182 = scmp.lt.s32.totalorder %s11, 2
    // Predicated region
    $region13: #{freq_time_separated_extractor.1} parent=5 // pred_check
      %p183 = pneg %p182
    $region14: #{freq_time_separated_extractor.1} parent=5 // pred_check_branch
      %185 = sbr.rel (%p183) target = $region16
    $region15: #{freq_time_separated_extractor.1} parent=5 // pred_region
      // Predicated region
      $region17: #{freq_time_separated_extractor.1} parent=15 // pred_check
        %p186 = pneg %p31
      $region18: #{freq_time_separated_extractor.1} parent=15 // pred_check_branch
        %188 = sbr.rel (%p186) target = $region20
      $region19: #{freq_time_separated_extractor.1} parent=15 // pred_region
        %p189 = scmp.lt.s32.totalorder %s11, 1
        %s190 = scalar_select %p189, %s11, 1
        %s191 = smul.addr %s190, 4
        %s192 = smul.addr %s191, 4
        %s193 = scalar_lea.vmem %s0, %s192
      $region20: #{freq_time_separated_extractor.1} parent=15 // pred_fallthru
        _
      // Predicated region
      $region21: #{freq_time_separated_extractor.1} parent=15 // pred_check
        %p194 = pneg %p57
      $region22: #{freq_time_separated_extractor.1} parent=15 // pred_check_branch
        %196 = sbr.rel (%p194) target = $region24
      $region23: #{freq_time_separated_extractor.1} parent=15 // pred_region
        %p197 = scmp.lt.s32.totalorder %s11, 1
        %s198 = scalar_select %p197, %s11, 1
        %s199 = smul.addr %s198, 4
        %s200 = scalar_lea.vmem %s1, %s199
      $region24: #{freq_time_separated_extractor.1} parent=15 // pred_fallthru
        _
      // Predicated region
      $region25: #{freq_time_separated_extractor.1} parent=15 // pred_check
        %p201 = pneg %p83
      $region26: #{freq_time_separated_extractor.1} parent=15 // pred_check_branch
        %203 = sbr.rel (%p201) target = $region28
      $region27: #{freq_time_separated_extractor.1} parent=15 // pred_region
        %p204 = scmp.lt.s32.totalorder %s11, 1
        %s205 = scalar_select %p204, %s11, 1
        %s206 = smul.addr %s205, 2
        %s207 = smul.addr %s206, 8
        %s208 = scalar_lea.vmem %s2, %s207
      $region28: #{freq_time_separated_extractor.1} parent=15 // pred_fallthru
        _
      // Predicated region
      $region29: #{freq_time_separated_extractor.1} parent=15 // pred_check
        %p209 = pneg %p109
      $region30: #{freq_time_separated_extractor.1} parent=15 // pred_check_branch
        %211 = sbr.rel (%p209) target = $region32
      $region31: #{freq_time_separated_extractor.1} parent=15 // pred_region
        %p212 = scmp.lt.s32.totalorder %s11, 1
        %s213 = scalar_select %p212, %s11, 1
        %s214 = smul.addr %s213, 2
        %s215 = smul.addr %s214, 4
        %s216 = scalar_lea.vmem %s3, %s215
      $region32: #{freq_time_separated_extractor.1} parent=15 // pred_fallthru
        _
      // Predicated region
      $region33: #{freq_time_separated_extractor.1} parent=15 // pred_check
        %p217 = pneg %p135
      $region34: #{freq_time_separated_extractor.1} parent=15 // pred_check_branch
        %219 = sbr.rel (%p217) target = $region36
      $region35: #{freq_time_separated_extractor.1} parent=15 // pred_region
        %p220 = scmp.lt.s32.totalorder %s11, 1
        %s221 = scalar_select %p220, %s11, 1
        %s222 = smul.addr %s221, 4
        %s223 = smul.addr %s222, 8
        %s224 = scalar_lea.vmem %s4, %s223
      $region36: #{freq_time_separated_extractor.1} parent=15 // pred_fallthru
        _
    $region16: #{freq_time_separated_extractor.1} parent=5 // pred_fallthru
      _
    %p225 = scmp.le.s32.totalorder 1, %s11
    %p226 = scmp.lt.s32.totalorder %s11, 3
    %p227 = pnand %p225, %p226
    %p228 = pneg %p227
    // Predicated region
    $region37: #{freq_time_separated_extractor.1} parent=5 // pred_check
      _
    $region38: #{freq_time_separated_extractor.1} parent=5 // pred_check_branch
      %230 = sbr.rel (%p227) target = $region40
    $region39: #{freq_time_separated_extractor.1} parent=5 // pred_region
      %s231 = ssub.s32 %s11, 1
      %p232 = scmp.lt.s32.totalorder %s16, 1
      %s233 = scalar_select %p232, %s16, 1
      %s234 = smul.addr %s233, 4
      %s235 = smul.addr %s234, 4
      %s236 = scalar_lea.vmem %s0, %s235
      %p237 = pneg %p37
      %p238 = pneg %p34
      %p239 = scmp.lt.s32.totalorder %s16, 1
      %s240 = scalar_select %p239, %s16, 1
      %s241 = smul.addr %s240, 4
      %s242 = scalar_lea.vmem %s1, %s241
      %p243 = pneg %p63
      %p244 = pneg %p60
      %p245 = scmp.lt.s32.totalorder %s16, 1
      %s246 = scalar_select %p245, %s16, 1
      %s247 = smul.addr %s246, 2
      %s248 = smul.addr %s247, 8
      %s249 = scalar_lea.vmem %s2, %s248
      %p250 = pneg %p89
      %p251 = pneg %p86
      %p252 = scmp.lt.s32.totalorder %s16, 1
      %s253 = scalar_select %p252, %s16, 1
      %s254 = smul.addr %s253, 2
      %s255 = smul.addr %s254, 4
      %s256 = scalar_lea.vmem %s3, %s255
      %p257 = pneg %p115
      %p258 = pneg %p112
      %p259 = scmp.lt.s32.totalorder %s16, 1
      %s260 = scalar_select %p259, %s16, 1
      %s261 = smul.addr %s260, 4
      %s262 = smul.addr %s261, 8
      %s263 = scalar_lea.vmem %s4, %s262
      %p264 = pneg %p141
      %p265 = pneg %p138
      %p266 = pneg %p167
      %p267 = pneg %p164
      %p268 = scmp.lt.s32.totalorder %s16, 1
      %s269 = scalar_select %p268, %s16, 1
      %s270 = smul.addr %s269, 2
      %s271 = smul.addr %s270, 8
      %s272 = scalar_lea.vmem %s5, %s271
      %p273 = scmp.lt.s32.totalorder %s16, 1
      %s274 = scalar_select %p273, %s16, 1
      %s275 = smul.addr %s274, 4
      %s276 = smul.addr %s275, 4
      %s277 = scalar_lea.vmem %s0, %s276
      %p278 = scmp.lt.s32.totalorder %s16, 1
      %s279 = scalar_select %p278, %s16, 1
      %s280 = smul.addr %s279, 4
      %s281 = scalar_lea.vmem %s1, %s280
      %p282 = scmp.lt.s32.totalorder %s16, 1
      %s283 = scalar_select %p282, %s16, 1
      %s284 = smul.addr %s283, 2
      %s285 = smul.addr %s284, 8
      %s286 = scalar_lea.vmem %s2, %s285
      %p287 = scmp.lt.s32.totalorder %s16, 1
      %s288 = scalar_select %p287, %s16, 1
      %s289 = smul.addr %s288, 2
      %s290 = smul.addr %s289, 4
      %s291 = scalar_lea.vmem %s3, %s290
      %p292 = scmp.lt.s32.totalorder %s16, 1
      %s293 = scalar_select %p292, %s16, 1
      %s294 = smul.addr %s293, 4
      %s295 = smul.addr %s294, 8
      %s296 = scalar_lea.vmem %s4, %s295
      %p297 = scmp.lt.s32.totalorder %s16, 1
      %s298 = scalar_select %p297, %s16, 1
      %s299 = smul.addr %s298, 2
      %s300 = smul.addr %s299, 8
      %s301 = scalar_lea.vmem %s5, %s300
      %v303 = vld [vmem:[%s281] sm:$0xf]
      %v304 = vld [vmem:[%s277] sm:$0xf]
      %v305 = vld [vmem:[%s277 + $0x4] sm:$0x3]
      %v306 = vld [vmem:[%s286] sm:$0xff]
      %v309 = vunpack.c.l.b16 %v304
      %v310 = vunpack.c.l.b16 %v305
      %v311 = vpack.c.b16 %v310, %v309
      %vm312 = vcmask 97280
      %v314 = vsel %vm312, %v303, 0
      %vm316 = vcmask 1045504
      %v318 = vsel %vm316, %v311, 0
      %320 = vmatprep.subr.bf16.mxu0 0
      %321 = vmatpush1.bf16.msra.mxu0 %v318
      %322 = vmatprep.subr.bf16.mxu0 0
      %323 = vmatpush1.bf16.msra.mxu0 0
      %324 = vmatprep.subr.bf16.mxu0 0
      %325 = vmatpush1.bf16.msra.mxu0 0
      %326 = vmatprep.subr.bf16.mxu0 0
      %327 = vmatpush1.bf16.msra.mxu0 0
      %328 = vmatprep.subr.bf16.mxu0 0
      %329 = vmatpush1.bf16.msra.mxu0 0
      %330 = vmatprep.subr.bf16.mxu0 0
      %331 = vmatpush1.bf16.msra.mxu0 0
      %332 = vmatprep.subr.bf16.mxu0 0
      %333 = vmatpush1.bf16.msra.mxu0 0
      %334 = vmatprep.subr.bf16.mxu0 0
      %335 = vmatpush1.bf16.msra.mxu0 0
      %336 = vmatprep.subr.bf16.mxu0 0
      %337 = vmatpush1.bf16.msra.mxu0 0
      %338 = vmatprep.subr.bf16.mxu0 0
      %339 = vmatpush1.bf16.msra.mxu0 0
      %340 = vmatprep.subr.bf16.mxu0 0
      %341 = vmatpush1.bf16.msra.mxu0 0
      %342 = vmatprep.subr.bf16.mxu0 0
      %343 = vmatpush1.bf16.msra.mxu0 0
      %344 = vmatprep.subr.bf16.mxu0 0
      %345 = vmatpush1.bf16.msra.mxu0 0
      %346 = vmatprep.subr.bf16.mxu0 0
      %347 = vmatpush1.bf16.msra.mxu0 0
      %348 = vmatprep.subr.bf16.mxu0 0
      %349 = vmatpush1.bf16.msra.mxu0 0
      %350 = vmatprep.subr.bf16.mxu0 0
      %351 = vmatpush1.bf16.msra.mxu0 0
      %352 = vmatprep.mubr.bf16.mxu0 0
      %353 = vmatmul.mubr.bf16.gmra.mrb[0].mxu0 %v314
      %v354 = vpop.f32.mrb[0].mxu0
      %v355 = vadd.f32 %v306, %v354
      %v356 = vpop.f32.mrb[0].mxu0
      %v357 = vpop.f32.mrb[0].mxu0
      %v358 = vpop.f32.mrb[0].mxu0
      %359 = vdwg.mxu0
      %v360 = vmax.f32 %v355, 0.0
      %s361 = scalar_lea.vmem %s277, 8
      %v362 = vld [vmem:[%s361] sm:$0xf]
      %v363 = vld [vmem:[%s361 + $0x4] sm:$0x3]
      %s364 = scalar_lea.vmem %s286, 8
      %v365 = vld [vmem:[%s364] sm:$0xff]
      %v368 = vunpack.c.l.b16 %v362
      %v369 = vunpack.c.l.b16 %v363
      %v370 = vpack.c.b16 %v369, %v368
      %v372 = vsel %vm316, %v370, 0
      %374 = vmatprep.subr.bf16.mxu0 0
      %375 = vmatpush1.bf16.msra.mxu0 %v372
      %376 = vmatprep.subr.bf16.mxu0 0
      %377 = vmatpush1.bf16.msra.mxu0 0
      %378 = vmatprep.subr.bf16.mxu0 0
      %379 = vmatpush1.bf16.msra.mxu0 0
      %380 = vmatprep.subr.bf16.mxu0 0
      %381 = vmatpush1.bf16.msra.mxu0 0
      %382 = vmatprep.subr.bf16.mxu0 0
      %383 = vmatpush1.bf16.msra.mxu0 0
      %384 = vmatprep.subr.bf16.mxu0 0
      %385 = vmatpush1.bf16.msra.mxu0 0
      %386 = vmatprep.subr.bf16.mxu0 0
      %387 = vmatpush1.bf16.msra.mxu0 0
      %388 = vmatprep.subr.bf16.mxu0 0
      %389 = vmatpush1.bf16.msra.mxu0 0
      %390 = vmatprep.subr.bf16.mxu0 0
      %391 = vmatpush1.bf16.msra.mxu0 0
      %392 = vmatprep.subr.bf16.mxu0 0
      %393 = vmatpush1.bf16.msra.mxu0 0
      %394 = vmatprep.subr.bf16.mxu0 0
      %395 = vmatpush1.bf16.msra.mxu0 0
      %396 = vmatprep.subr.bf16.mxu0 0
      %397 = vmatpush1.bf16.msra.mxu0 0
      %398 = vmatprep.subr.bf16.mxu0 0
      %399 = vmatpush1.bf16.msra.mxu0 0
      %400 = vmatprep.subr.bf16.mxu0 0
      %401 = vmatpush1.bf16.msra.mxu0 0
      %402 = vmatprep.subr.bf16.mxu0 0
      %403 = vmatpush1.bf16.msra.mxu0 0
      %404 = vmatprep.subr.bf16.mxu0 0
      %405 = vmatpush1.bf16.msra.mxu0 0
      %406 = vmatprep.mubr.bf16.mxu0 0
      %407 = vmatmul.mubr.bf16.gmra.mrb[0].mxu0 %v314
      %v408 = vpop.f32.mrb[0].mxu0
      %v409 = vadd.f32 %v365, %v408
      %v410 = vpop.f32.mrb[0].mxu0
      %v411 = vpop.f32.mrb[0].mxu0
      %v412 = vpop.f32.mrb[0].mxu0
      %413 = vdwg.mxu0
      %v414 = vmax.f32 %v409, 0.0
      %v415 = vmax.f32 %v360, %v414
      %v416 = vld [vmem:[%s291] sm:$0xf]
      %v417 = vld [vmem:[%s291 + $0x4] sm:$0xf]
      %419 = vrot.lane.b32.xlu0 %v415, 120
      %v420 = vpop.permute.xlu0 %419
      %vm422 = vcmask 195584
      %v423 = vsel %vm422, %v420, 0.0
      %424 = vrot.lane.b32.xlu0 %v415, 96
      %v425 = vpop.permute.xlu0 %424
      %v427 = vpack.c.bf16 %v425, %v415
      %v428 = vpack.c.bf16 %v423, %v423
      %v429 = vld [vmem:[%s296] sm:$0xff]
      %v430 = vld [vmem:[%s296 + $0x8] sm:$0xff]
      %v433 = vunpack.c.l.b16 %v416
      %v434 = vunpack.c.l.b16 %v417
      %v435 = vpack.c.b16 %v434, %v433
      %v437 = vsel %vm422, %v435, 0
      %vm439 = vcmask 1043456
      %v441 = vsel %vm439, %v428, 0
      %443 = vmatprep.subr.bf16.mxu0 0
      %444 = vmatpush1.bf16.msra.mxu0 %v427
      %445 = vmatprep.subr.bf16.mxu0 0
      %446 = vmatpush1.bf16.msra.mxu0 %v441
      %447 = vmatprep.subr.bf16.mxu0 0
      %448 = vmatpush1.bf16.msra.mxu0 0
      %449 = vmatprep.subr.bf16.mxu0 0
      %450 = vmatpush1.bf16.msra.mxu0 0
      %451 = vmatprep.subr.bf16.mxu0 0
      %452 = vmatpush1.bf16.msra.mxu0 0
      %453 = vmatprep.subr.bf16.mxu0 0
      %454 = vmatpush1.bf16.msra.mxu0 0
      %455 = vmatprep.subr.bf16.mxu0 0
      %456 = vmatpush1.bf16.msra.mxu0 0
      %457 = vmatprep.subr.bf16.mxu0 0
      %458 = vmatpush1.bf16.msra.mxu0 0
      %459 = vmatprep.subr.bf16.mxu0 0
      %460 = vmatpush1.bf16.msra.mxu0 0
      %461 = vmatprep.subr.bf16.mxu0 0
      %462 = vmatpush1.bf16.msra.mxu0 0
      %463 = vmatprep.subr.bf16.mxu0 0
      %464 = vmatpush1.bf16.msra.mxu0 0
      %465 = vmatprep.subr.bf16.mxu0 0
      %466 = vmatpush1.bf16.msra.mxu0 0
      %467 = vmatprep.subr.bf16.mxu0 0
      %468 = vmatpush1.bf16.msra.mxu0 0
      %469 = vmatprep.subr.bf16.mxu0 0
      %470 = vmatpush1.bf16.msra.mxu0 0
      %471 = vmatprep.subr.bf16.mxu0 0
      %472 = vmatpush1.bf16.msra.mxu0 0
      %473 = vmatprep.subr.bf16.mxu0 0
      %474 = vmatpush1.bf16.msra.mxu0 0
      %475 = vmatprep.mubr.bf16.mxu0 0
      %476 = vmatmul.mubr.bf16.gmra.mrb[0].mxu0 %v437
      %v477 = vpop.f32.mrb[0].mxu0
      %v478 = vadd.f32 %v429, %v477
      %v479 = vpop.f32.mrb[0].mxu0
      %v480 = vpop.f32.mrb[0].mxu0
      %v481 = vadd.f32 %v430, %v480
      %v482 = vpop.f32.mrb[0].mxu0
      %483 = vdwg.mxu0
      %v484 = vmax.f32 %v478, 0.0
      %v485 = vmax.f32 %v481, 0.0
      %486 = vrot.lane.b32.xlu0 %v415, 56
      %v487 = vpop.permute.xlu0 %486
      %v489 = vsel %vm422, %v487, 0.0
      %491 = vrot.lane.b32.xlu0 %v489, 64
      %v492 = vpop.permute.xlu0 %491
      %v494 = vpack.c.bf16 %v492, %v492
      %s495 = scalar_lea.vmem %s296, 16
      %v496 = vld [vmem:[%s495] sm:$0xff]
      %v497 = vld [vmem:[%s495 + $0x8] sm:$0xff]
      %500 = vrot.lane.b32.xlu0 %v427, 64
      %v501 = vpop.permute.xlu0 %500
      %502 = vrot.lane.b32.xlu0 %v494, 64
      %v503 = vpop.permute.xlu0 %502
      %v506 = vsel %vm439, %v503, 0
      %508 = vmatprep.subr.bf16.mxu0 0
      %509 = vmatpush1.bf16.msra.mxu0 %v501
      %510 = vmatprep.subr.bf16.mxu0 0
      %511 = vmatpush1.bf16.msra.mxu0 %v506
      %512 = vmatprep.subr.bf16.mxu0 0
      %513 = vmatpush1.bf16.msra.mxu0 0
      %514 = vmatprep.subr.bf16.mxu0 0
      %515 = vmatpush1.bf16.msra.mxu0 0
      %516 = vmatprep.subr.bf16.mxu0 0
      %517 = vmatpush1.bf16.msra.mxu0 0
      %518 = vmatprep.subr.bf16.mxu0 0
      %519 = vmatpush1.bf16.msra.mxu0 0
      %520 = vmatprep.subr.bf16.mxu0 0
      %521 = vmatpush1.bf16.msra.mxu0 0
      %522 = vmatprep.subr.bf16.mxu0 0
      %523 = vmatpush1.bf16.msra.mxu0 0
      %524 = vmatprep.subr.bf16.mxu0 0
      %525 = vmatpush1.bf16.msra.mxu0 0
      %526 = vmatprep.subr.bf16.mxu0 0
      %527 = vmatpush1.bf16.msra.mxu0 0
      %528 = vmatprep.subr.bf16.mxu0 0
      %529 = vmatpush1.bf16.msra.mxu0 0
      %530 = vmatprep.subr.bf16.mxu0 0
      %531 = vmatpush1.bf16.msra.mxu0 0
      %532 = vmatprep.subr.bf16.mxu0 0
      %533 = vmatpush1.bf16.msra.mxu0 0
      %534 = vmatprep.subr.bf16.mxu0 0
      %535 = vmatpush1.bf16.msra.mxu0 0
      %536 = vmatprep.subr.bf16.mxu0 0
      %537 = vmatpush1.bf16.msra.mxu0 0
      %538 = vmatprep.subr.bf16.mxu0 0
      %539 = vmatpush1.bf16.msra.mxu0 0
      %540 = vmatprep.mubr.bf16.mxu0 0
      %541 = vmatmul.mubr.bf16.gmra.mrb[0].mxu0 %v437
      %v542 = vpop.f32.mrb[0].mxu0
      %v543 = vadd.f32 %v496, %v542
      %v544 = vpop.f32.mrb[0].mxu0
      %v545 = vpop.f32.mrb[0].mxu0
      %v546 = vadd.f32 %v497, %v545
      %v547 = vpop.f32.mrb[0].mxu0
      %548 = vdwg.mxu0
      %v549 = vmax.f32 %v543, 0.0
      %v550 = vmax.f32 %v546, 0.0
      %v551 = vmax.f32 %v484, %v549
      %v552 = vmax.f32 %v485, %v550
      %vm553 = vcmask 261120
      %554 = vst.msk [vmem:[%s301] sm:$0xff] %vm553, %v551
      %555 = vst.msk [vmem:[%s301 + $0x8] sm:$0xff] %vm553, %v552
      %p556 = scmp.lt.s32.totalorder %s16, 1
      %s557 = scalar_select %p556, %s16, 1
      %s558 = smul.addr %s557, 2
      %s559 = smul.addr %s558, 8
      %s560 = scalar_lea.vmem %s5, %s559
      // Predicated region
      $region41: #{freq_time_separated_extractor.1} parent=39 // pred_check
        %p561 = pneg %p164
      $region42: #{freq_time_separated_extractor.1} parent=39 // pred_check_branch
        %563 = sbr.rel (%p561) target = $region44
      $region43: #{freq_time_separated_extractor.1} parent=39 // pred_region
        _
      $region44: #{freq_time_separated_extractor.1} parent=39 // pred_fallthru
        _
    $region40: #{freq_time_separated_extractor.1} parent=5 // pred_fallthru
      _
    %p564 = scmp.le.s32.totalorder 2, %s11
    // Predicated region
    $region45: #{freq_time_separated_extractor.1} parent=5 // pred_check
      %p565 = pneg %p564
    $region46: #{freq_time_separated_extractor.1} parent=5 // pred_check_branch
      %567 = sbr.rel (%p565) target = $region48
    $region47: #{freq_time_separated_extractor.1} parent=5 // pred_region
      %s568 = ssub.s32 %s11, 2
      // Predicated region
      $region49: #{freq_time_separated_extractor.1} parent=47 // pred_check
        %p569 = pneg %p170
      $region50: #{freq_time_separated_extractor.1} parent=47 // pred_check_branch
        %571 = sbr.rel (%p569) target = $region52
      $region51: #{freq_time_separated_extractor.1} parent=47 // pred_region
        %p572 = scmp.lt.s32.totalorder %s17, 1
        %s573 = scalar_select %p572, %s17, 1
        %s574 = smul.addr %s573, 2
        %s575 = smul.addr %s574, 8
        %s576 = scalar_lea.vmem %s5, %s575
      $region52: #{freq_time_separated_extractor.1} parent=47 // pred_fallthru
        _
    $region48: #{freq_time_separated_extractor.1} parent=5 // pred_fallthru
      _
  $region6: #{freq_time_separated_extractor.1} parent=0 // loop_footer
    %s15 = sadd.s32 1, %s11
  $region7: #{freq_time_separated_extractor.1} parent=0 // loop_footer_branch
    %10 = sbr.rel target = $region3
  $region8: #{freq_time_separated_extractor.1} parent=0 // loop_exit
    _

</llo_original>
